<compile_context>
chip_gen: v7x
topology: tpu7x:2x2x1
jax: 0.10.0
libtpu: 0.0.40
codegen_flags: <defaults>
</compile_context>

<pallas_src>
import jax
import jax.numpy as jnp
from jax.experimental import pallas as pl
from jax.experimental.pallas import tpu as pltpu

_LANE = 128


def _round_up(x, m):
    return ((x + m - 1) // m) * m


def planar_flow_kernel(z_ref, w_ref, b_ref, s_ref, o_ref):
    # z_ref : (TB, Dp)  batch tile, native dtype (f32 or bf16)
    # w_ref : (1, Dp)   weight, f32, resident
    # b_ref : (1,)      bias scalar in SMEM, f32
    # s_ref : (1, Dp)   scale, f32, resident
    z = z_ref[...]                # native dtype
    w = w_ref[...]                # (1, Dp) f32
    s = s_ref[...]                # (1, Dp) f32
    b = b_ref[0]                  # scalar from SMEM

    # activation = z . w + b  -> VPU multiply + XLU lane reduce, f32 accumulation
    # (do NOT route this through the MXU: the output column count is 1).
    act = jnp.sum(z * w, axis=-1, keepdims=True) + b     # (TB, 1) f32
    t = jnp.tanh(act)                                    # (TB, 1) f32 (EUP)

    # out = z + scale * tanh(act); cast the update once, keep the big add in
    # the input's native dtype.
    o_ref[...] = z + (s * t).astype(o_ref.dtype)


def planar_flow(z, weight, bias, scale, *, tile_b=None,
                vmem_limit_bytes=32 * 1024 * 1024):
    B, D = z.shape
    dtype = z.dtype
    itemsize = jnp.dtype(dtype).itemsize
    sub = 16 if itemsize == 2 else 8          # sublane packing multiple

    # Lane-dense last dim: pad D up to a multiple of 128 (unmasked stores).
    Dp = _round_up(D, _LANE)

    # Batch tile: target ~512 rows, multiple of `sub`, capped by the (padded)
    # batch and by a VMEM budget for double-buffered in+out tiles
    # (~4 * TB * Dp * itemsize), which stays safe on v7x's 64 MiB VMEM.
    if tile_b is None:
        tile_b = 512
    budget = 24 * 1024 * 1024
    max_tb = max(sub, (budget // (4 * Dp * itemsize)) // sub * sub)
    tile_b = min(_round_up(tile_b, sub), max_tb, _round_up(B, sub))

    Bp = _round_up(B, tile_b)

    # Zero padding is exact: padded weight/scale columns contribute nothing,
    # padded batch rows are sliced away at the end.
    if (Bp, Dp) != (B, D):
        zp = jnp.zeros((Bp, Dp), dtype).at[:B, :D].set(z)
    else:
        zp = z
    wp = jnp.zeros((1, Dp), jnp.float32).at[:, :D].set(weight.astype(jnp.float32))
    sp = jnp.zeros((1, Dp), jnp.float32).at[:, :D].set(scale.astype(jnp.float32))
    bp = bias.reshape(-1).astype(jnp.float32)            # (1,) scalar -> SMEM

    out = pl.pallas_call(
        planar_flow_kernel,
        out_shape=jax.ShapeDtypeStruct((Bp, Dp), dtype),
        grid_spec=pltpu.PrefetchScalarGridSpec(
            num_scalar_prefetch=0,
            grid=(Bp // tile_b,),
            in_specs=[
                pl.BlockSpec((tile_b, Dp), lambda i: (i, 0)),       # z tile
                pl.BlockSpec((1, Dp), lambda i: (0, 0)),            # weight
                pl.BlockSpec(memory_space=pltpu.MemorySpace.SMEM),  # bias scalar
                pl.BlockSpec((1, Dp), lambda i: (0, 0)),            # scale
            ],
            out_specs=pl.BlockSpec((tile_b, Dp), lambda i: (i, 0)),
        ),
        compiler_params=pltpu.CompilerParams(
            dimension_semantics=("parallel",),
            vmem_limit_bytes=vmem_limit_bytes,
        ),
    )(zp, wp, bp, sp)

    if (Bp, Dp) != (B, D):
        out = out[:B, :D]
    return out


def planar_flow_ref(z, weight, bias, scale):
    act = z @ weight.T + bias             # (B, 1)
    return z + scale * jnp.tanh(act)      # (B, D)


if __name__ == "__main__":
    B, D = 8, 32

    key = jax.random.PRNGKey(0)
    kz, kw, kb, ks = jax.random.split(key, 4)

    # Parameter init mirroring reset_parameters(): U(-0.01, 0.01)
    weight = jax.random.uniform(kw, (1, D), jnp.float32, -0.01, 0.01)
    scale = jax.random.uniform(ks, (1, D), jnp.float32, -0.01, 0.01)
    bias = jax.random.uniform(kb, (1,), jnp.float32, -0.01, 0.01)

    z = jax.random.normal(kz, (B, D), jnp.float32)

    out = planar_flow(z, weight, bias, scale)
    out = jax.block_until_ready(out)

    ref = planar_flow_ref(z, weight, bias, scale)
    assert out.shape == (B, D)
    assert jnp.allclose(out, ref, atol=1e-6, rtol=1e-6), "mismatch vs reference"

    print("KERNEL_OK")
</pallas_src>

<mosaic_0001>
module attributes {stable_mosaic.version = 11 : i64} {
  func.func @planar_flow_kernel(%arg0: i32, %arg1: memref<8x128xf32, #tpu.memory_space<vmem>>, %arg2: memref<1x128xf32, #tpu.memory_space<vmem>>, %arg3: memref<1xf32, #tpu.memory_space<smem>>, %arg4: memref<1x128xf32, #tpu.memory_space<vmem>>, %arg5: memref<8x128xf32, #tpu.memory_space<vmem>>) attributes {dimension_semantics = [#tpu.dimension_semantics<parallel>], iteration_bounds = array<i64: 1>, scalar_prefetch = 0 : i64, scratch_operands = 0 : i64, tpu.core_type = #tpu.core_type<tc>, window_params = [{transform_indices = @transform_0, window_bounds = array<i64: 8, 128>}, {pipeline_mode = #tpu.pipeline_mode<synchronous>, transform_indices = @transform_1, window_bounds = array<i64: 1, 128>}, {transform_indices = @transform_2, window_bounds = array<i64: 1>}, {pipeline_mode = #tpu.pipeline_mode<synchronous>, transform_indices = @transform_3, window_bounds = array<i64: 1, 128>}, {transform_indices = @transform_4, window_bounds = array<i64: 8, 128>}]} {
    %c0 = arith.constant 0 : index
    %c0_0 = arith.constant 0 : index
    %0 = vector.load %arg1[%c0, %c0_0] : memref<8x128xf32, #tpu.memory_space<vmem>>, vector<8x128xf32>
    %c0_1 = arith.constant 0 : index
    %c0_2 = arith.constant 0 : index
    %1 = vector.load %arg2[%c0_1, %c0_2] : memref<1x128xf32, #tpu.memory_space<vmem>>, vector<1x128xf32>
    %c0_3 = arith.constant 0 : index
    %c0_4 = arith.constant 0 : index
    %2 = vector.load %arg4[%c0_3, %c0_4] : memref<1x128xf32, #tpu.memory_space<vmem>>, vector<1x128xf32>
    %c0_5 = arith.constant 0 : index
    %3 = memref.load %arg3[%c0_5] : memref<1xf32, #tpu.memory_space<smem>>
    %4 = vector.broadcast %1 : vector<1x128xf32> to vector<8x128xf32>
    %5 = arith.mulf %0, %4 : vector<8x128xf32>
    %cst = arith.constant dense<0.000000e+00> : vector<8xf32>
    %6 = vector.multi_reduction <add>, %5, %cst [1] : vector<8x128xf32> to vector<8xf32>
    %7 = vector.shape_cast %6 : vector<8xf32> to vector<8x1xf32>
    %8 = vector.broadcast %3 : f32 to vector<8x1xf32>
    %9 = arith.addf %7, %8 : vector<8x1xf32>
    %10 = math.tanh %9 : vector<8x1xf32>
    %11 = vector.broadcast %2 : vector<1x128xf32> to vector<8x128xf32>
    %12 = vector.broadcast %10 : vector<8x1xf32> to vector<8x128xf32>
    %13 = arith.mulf %11, %12 : vector<8x128xf32>
    %14 = arith.addf %0, %13 : vector<8x128xf32>
    %c0_6 = arith.constant 0 : index
    %c0_7 = arith.constant 0 : index
    %15 = vector.load %arg5[%c0_6, %c0_7] : memref<8x128xf32, #tpu.memory_space<vmem>>, vector<8x128xf32>
    tpu.vector_store %arg5[%c0_6, %c0_7], %14 {strides = array<i32>} : memref<8x128xf32, #tpu.memory_space<vmem>>, vector<8x128xf32>,
    return
  }
  func.func @transform_0(%arg0: i32) -> (i32, i32) {
    %c0_i32 = arith.constant 0 : i32
    %c0_i32_0 = arith.constant 0 : i32
    return %arg0, %c0_i32 : i32, i32
  }
  func.func @transform_1(%arg0: i32) -> (i32, i32) {
    %c0_i32 = arith.constant 0 : i32
    %c0_i32_0 = arith.constant 0 : i32
    %c0_i32_1 = arith.constant 0 : i32
    return %c0_i32, %c0_i32_0 : i32, i32
  }
  func.func @transform_2(%arg0: i32) -> i32 {
    %c0_i32 = arith.constant 0 : i32
    %c0_i32_0 = arith.constant 0 : i32
    return %c0_i32 : i32
  }
  func.func @transform_3(%arg0: i32) -> (i32, i32) {
    %c0_i32 = arith.constant 0 : i32
    %c0_i32_0 = arith.constant 0 : i32
    %c0_i32_1 = arith.constant 0 : i32
    return %c0_i32, %c0_i32_0 : i32, i32
  }
  func.func @transform_4(%arg0: i32) -> (i32, i32) {
    %c0_i32 = arith.constant 0 : i32
    %c0_i32_0 = arith.constant 0 : i32
    return %arg0, %c0_i32 : i32, i32
  }
}

</mosaic_0001>

<llo_original>
// kernel: tpu_custom_call.1
$region0: #{tpu_custom_call.1}
  #allocation0 [shape = 'u32[]', space=smem, size = 0x4, offset = 0x4, fixed_abs, tag = 'smem constant byte address 0x4 - core index']
  #allocation1 [shape = 'u32[144,128]{1,0:T(1,128)}', space=vmem, size = 0x12000, scoped, tag = 'internal scratch']
  #allocation2 [shape = 'f32[1]{0:T(128)S(6)}', space=smem, size = 0x200, scoped, tag = 'scoped memory for tpu_custom_call.1']
  %s0 = inlined_call_operand.hbm [shape: f32[8,128], index: 0, kind: input, shape index: {}]
  %s1 = inlined_call_operand.vmem [shape: f32[1,128], index: 1, kind: input, shape index: {}]
  %s2 = inlined_call_operand.<no memory space> [shape: f32[1], index: 2, kind: input, shape index: {}]
  %s3 = inlined_call_operand.vmem [shape: f32[1,128], index: 3, kind: input, shape index: {}]
  %s4 = inlined_call_operand.hbm [shape: f32[8,128], index: 4, kind: output, shape index: {}]
  %s5 = sld [smem:[#allocation0]]
  $region30: #{tpu_custom_call.1} parent=0
    _
  %s7 = ssub.s32 1, %s5
  %s8 = scalar_select 0, %s7, %s5
  %9 = sst [smem:[#allocation2]] %s2
  $region1: #{tpu_custom_call.1} parent=0
    #allocation3 [shape = 'u8[4096]{0}', space=vmem, size = 0x1000, scoped, tag = 'input window, operand 0, single buffered']
    #allocation4 [shape = 's32[1]{0}', space=sflag, size = 0x4, scoped, tag = 'scoped memory for tpu_custom_call.1']
    #allocation5 [shape = 's32[1]{0}', space=sflag, size = 0x4, scoped, tag = 'scoped memory for tpu_custom_call.1']
    #allocation6 [shape = 'u8[4096]{0}', space=vmem, size = 0x1000, scoped, tag = 'output window, operand 0, single buffered']
    %10 = vsyncpa [#allocation4], 0
    %11 = vsyncpa [#allocation5], 0
    // Predicated region
    $region2: #{tpu_custom_call.1} parent=1 // pred_check
      _
    $region3: #{tpu_custom_call.1} parent=1 // pred_check_branch
      %13 = sbr.rel (0) target = $region5
    $region4: #{tpu_custom_call.1} parent=1 // pred_region
      %s15 = ssub.s32 128, 128
      %16 = vsyncadd [#allocation4], %s15
      %s18 = sshll.u32 [#allocation3], 4
      %s19 = int_to_ptr.vmem [resolvable:$true] %s18
      %21 = dma.hbm_to_vmem [thread:$0]  %s0, 128, %s19, [#allocation4]
    $region5: #{tpu_custom_call.1} parent=1 // pred_fallthru
      _
    // Predicated region
    $region6: #{tpu_custom_call.1} parent=1 // pred_check
      _
    $region7: #{tpu_custom_call.1} parent=1 // pred_check_branch
      %23 = sbr.rel (0) target = $region9
    $region8: #{tpu_custom_call.1} parent=1 // pred_region
      _
    $region9: #{tpu_custom_call.1} parent=1 // pred_fallthru
      _
    // Predicated region
    $region10: #{tpu_custom_call.1} parent=1 // pred_check
      _
    $region11: #{tpu_custom_call.1} parent=1 // pred_check_branch
      %25 = sbr.rel (0) target = $region13
    $region12: #{tpu_custom_call.1} parent=1 // pred_region
      _
    $region13: #{tpu_custom_call.1} parent=1 // pred_fallthru
      _
    // Predicated region
    $region14: #{tpu_custom_call.1} parent=1 // pred_check
      _
    $region15: #{tpu_custom_call.1} parent=1 // pred_check_branch
      %27 = sbr.rel (0) target = $region17
    $region16: #{tpu_custom_call.1} parent=1 // pred_region
      _
    $region17: #{tpu_custom_call.1} parent=1 // pred_fallthru
      _
    // Predicated region
    $region18: #{tpu_custom_call.1} parent=1 // pred_check
      _
    $region19: #{tpu_custom_call.1} parent=1 // pred_check_branch
      %29 = sbr.rel (0) target = $region21
    $region20: #{tpu_custom_call.1} parent=1 // pred_region
      %30 = dma.done [#allocation4], 128
    $region21: #{tpu_custom_call.1} parent=1 // pred_fallthru
      _
    %v31 = vld [vmem:[#allocation3] sm:$0xff]
    %v32 = vld [vmem:[%s1] sm:$0x1]
    %v33 = vld [vmem:[%s3] sm:$0x1]
    %s34 = sld [smem:[#allocation2]]
    %v36 = vlaneseq
    %v37 = vshrl.u32 %v36, 7
    %v38 = vsub.s32 0, %v37
    %v39 = vrot.slane %v32, %v38
    %v41 = vmul.f32 %v31, %v39
    %42 = vadd.xlane.f32.xlu0 %v41
    %v43 = vpop.xlane.xlu0 %42
    %v44 = vstv %s34
    %v45 = vadd.f32 %v43, %v44
    %v46 = vtanh.pop %v45
    %v48 = vlaneseq
    %v49 = vshrl.u32 %v48, 7
    %v50 = vsub.s32 0, %v49
    %v51 = vrot.slane %v33, %v50
    %v53 = vmul.f32 %v51, %v46
    %v54 = vadd.f32 %v31, %v53
    %55 = vst [vmem:[#allocation6] sm:$0xff] %v54
    // Predicated region
    $region22: #{tpu_custom_call.1} parent=1 // pred_check
      _
    $region23: #{tpu_custom_call.1} parent=1 // pred_check_branch
      %57 = sbr.rel (0) target = $region25
    $region24: #{tpu_custom_call.1} parent=1 // pred_region
      %s59 = ssub.s32 128, 128
      %60 = vsyncadd [#allocation5], %s59
      %s62 = sshll.u32 [#allocation6], 4
      %s63 = int_to_ptr.vmem [resolvable:$true] %s62
      %65 = dma.vmem_to_hbm [thread:$0]  %s63, 128, %s4, [#allocation5]
    $region25: #{tpu_custom_call.1} parent=1 // pred_fallthru
      _
    // Predicated region
    $region26: #{tpu_custom_call.1} parent=1 // pred_check
      _
    $region27: #{tpu_custom_call.1} parent=1 // pred_check_branch
      %67 = sbr.rel (0) target = $region29
    $region28: #{tpu_custom_call.1} parent=1 // pred_region
      %68 = dma.done [#allocation5], 128
    $region29: #{tpu_custom_call.1} parent=1 // pred_fallthru
      _
    %69 = vsyncpa [#allocation4], 1
    %70 = vsyncpa [#allocation5], 1

</llo_original>
